<compile_context>
chip_gen: v7x
topology: tpu7x:2x2x1
jax: 0.10.0
libtpu: 0.0.40
codegen_flags: <defaults>
</compile_context>

<pallas_src>
import functools

import jax
import jax.numpy as jnp
from jax.experimental import pallas as pl
from jax.experimental.pallas import tpu as pltpu


def rnn_seq_kernel(x_ref, h0_ref,
                   w1x_ref, w1h_ref, b1_ref,
                   w2_ref, b2_ref,
                   out_ref, hfin_ref,
                   h_scratch, *, hidden_size):
    """One grid step == one timestep; weights resident, h carried in VMEM scratch."""
    t = pl.program_id(0)

    @pl.when(t == 0)
    def _():
        h_scratch[...] = h0_ref[...]

    x = x_ref[0]                # (B, input_size) -- current timestep slice
    h = h_scratch[...]          # (B, hidden_size)

    # Packed Linear #1:  [h_new | o1] = i2h(cat(x,h)) || i2o(cat(x,h))
    ho = (jnp.dot(x, w1x_ref[...], preferred_element_type=jnp.float32)
          + jnp.dot(h, w1h_ref[...], preferred_element_type=jnp.float32)
          + b1_ref[...])

    # Packed Linear #2:  o2 = o2o(cat(h_new, o1)) == [h_new | o1] @ W2 + b2
    o2 = jnp.dot(ho, w2_ref[...], preferred_element_type=jnp.float32) + b2_ref[...]

    # dropout (eval mode) == identity, then LogSoftmax over dim=1 (features)
    m = jnp.max(o2, axis=-1, keepdims=True)
    z = o2 - m
    lse = jnp.log(jnp.sum(jnp.exp(z), axis=-1, keepdims=True))
    out_ref[0] = (z - lse).astype(out_ref.dtype)

    # Carry hidden state; final-hidden output block index is constant so the
    # HBM writeback only happens once at the end of the grid.
    h_new = ho[:, :hidden_size]
    h_scratch[...] = h_new
    hfin_ref[...] = h_new.astype(hfin_ref.dtype)


def rnn_forward_sequence(x_seq, h0, packed_params):
    """Run T timesteps of RNNModel.forward in a single pallas_call.

    Returns (log_probs with shape (T, B, output_size), final hidden (B, hidden)).
    """
    w1x, w1h, b1, w2, b2 = packed_params
    T, B, input_size = x_seq.shape
    hidden_size = w1h.shape[0]
    ho_size = w1x.shape[1]           # hidden_size + output_size
    output_size = w2.shape[1]

    # Hoist bias broadcasts out of the time loop (resident (B, F) tiles).
    b1b = jnp.broadcast_to(b1, (B, ho_size))
    b2b = jnp.broadcast_to(b2, (B, output_size))

    in_specs = [
        pl.BlockSpec((1, B, input_size), lambda t: (t, 0, 0)),      # x[t]
        pl.BlockSpec((B, hidden_size), lambda t: (0, 0)),           # h0 (resident)
        pl.BlockSpec((input_size, ho_size), lambda t: (0, 0)),      # W1x (resident)
        pl.BlockSpec((hidden_size, ho_size), lambda t: (0, 0)),     # W1h (resident)
        pl.BlockSpec((B, ho_size), lambda t: (0, 0)),               # b1  (resident)
        pl.BlockSpec((ho_size, output_size), lambda t: (0, 0)),     # W2  (resident)
        pl.BlockSpec((B, output_size), lambda t: (0, 0)),           # b2  (resident)
    ]
    out_specs = (
        pl.BlockSpec((1, B, output_size), lambda t: (t, 0, 0)),     # per-step log-probs
        pl.BlockSpec((B, hidden_size), lambda t: (0, 0)),           # final hidden
    )
    out_shape = (
        jax.ShapeDtypeStruct((T, B, output_size), jnp.float32),
        jax.ShapeDtypeStruct((B, hidden_size), jnp.float32),
    )

    kernel = functools.partial(rnn_seq_kernel, hidden_size=hidden_size)
    return pl.pallas_call(
        kernel,
        out_shape=out_shape,
        grid_spec=pltpu.PrefetchScalarGridSpec(
            num_scalar_prefetch=0,
            grid=(T,),
            in_specs=in_specs,
            out_specs=out_specs,
            scratch_shapes=[pltpu.VMEM((B, hidden_size), jnp.float32)],
        ),
        compiler_params=pltpu.CompilerParams(
            dimension_semantics=("arbitrary",),   # time axis is a true recurrence
        ),
    )(x_seq, h0, w1x, w1h, b1b, w2, b2b)


def init_params(key, input_size, hidden_size, output_size):
    """nn.Linear-style init; weights stored pre-transposed as (in, out) and the
    concatenated Linear layers split along their input dimension."""
    ks = jax.random.split(key, 6)

    def lin(kw, kb, fan_in, fan_out):
        bound = 1.0 / jnp.sqrt(fan_in)
        w = jax.random.uniform(kw, (fan_in, fan_out), jnp.float32, -bound, bound)
        b = jax.random.uniform(kb, (1, fan_out), jnp.float32, -bound, bound)
        return w, b

    # i2h: Linear(input_size + hidden_size -> hidden_size)
    w_i2h, b_ih = lin(ks[0], ks[1], input_size + hidden_size, hidden_size)
    w_ihx, w_ihh = w_i2h[:input_size], w_i2h[input_size:]
    # i2o: Linear(input_size + hidden_size -> output_size)
    w_i2o, b_io = lin(ks[2], ks[3], input_size + hidden_size, output_size)
    w_iox, w_ioh = w_i2o[:input_size], w_i2o[input_size:]
    # o2o: Linear(hidden_size + output_size -> output_size)
    w_o2o, b_oo = lin(ks[4], ks[5], hidden_size + output_size, output_size)
    w_ooh, w_ooo = w_o2o[:hidden_size], w_o2o[hidden_size:]

    return (w_ihx, w_ihh, b_ih, w_iox, w_ioh, b_io, w_ooh, w_ooo, b_oo)


def pack_params(params):
    """Pack the 3 Linear layers into the fused form used by the kernel."""
    (w_ihx, w_ihh, b_ih, w_iox, w_ioh, b_io, w_ooh, w_ooo, b_oo) = params
    w1x = jnp.concatenate([w_ihx, w_iox], axis=1)   # (input,  hidden+output)
    w1h = jnp.concatenate([w_ihh, w_ioh], axis=1)   # (hidden, hidden+output)
    b1 = jnp.concatenate([b_ih, b_io], axis=1)      # (1,      hidden+output)
    w2 = jnp.concatenate([w_ooh, w_ooo], axis=0)    # (hidden+output, output)
    b2 = b_oo                                       # (1, output)
    return (w1x, w1h, b1, w2, b2)


def reference_sequence(x_seq, h0, params):
    """Pure-JAX reference: per-step RNNModel.forward scanned over time."""
    (w_ihx, w_ihh, b_ih, w_iox, w_ioh, b_io, w_ooh, w_ooo, b_oo) = params

    def step(h, x):
        h_new = x @ w_ihx + h @ w_ihh + b_ih
        o1 = x @ w_iox + h @ w_ioh + b_io
        o2 = h_new @ w_ooh + o1 @ w_ooo + b_oo
        return h_new, jax.nn.log_softmax(o2, axis=1)

    h_fin, outs = jax.lax.scan(step, h0, x_seq)
    return outs, h_fin


if __name__ == "__main__":
    input_size = 16     # e.g. n_letters (one-hot)
    hidden_size = 32
    output_size = 16
    batch = 8           # multiple of 8 sublanes (f32) per layout feedback
    seq_len = 12

    key = jax.random.PRNGKey(0)
    k_x, k_p = jax.random.split(key)

    x_seq = jax.random.normal(k_x, (seq_len, batch, input_size), jnp.float32)
    h0 = jnp.zeros((batch, hidden_size), jnp.float32)   # initHidden()
    params = init_params(k_p, input_size, hidden_size, output_size)
    packed = pack_params(params)

    log_probs, h_fin = rnn_forward_sequence(x_seq, h0, packed)
    jax.block_until_ready((log_probs, h_fin))

    ref_lp, ref_h = reference_sequence(x_seq, h0, params)
    assert log_probs.shape == (seq_len, batch, output_size)
    assert h_fin.shape == (batch, hidden_size)
    assert jnp.allclose(log_probs, ref_lp, atol=1e-4), "log_softmax output mismatch"
    assert jnp.allclose(h_fin, ref_h, atol=1e-4), "hidden output mismatch"

    print("KERNEL_OK")
</pallas_src>

<mosaic_0001>
module attributes {stable_mosaic.version = 11 : i64} {
  func.func @rnn_seq_kernel(%arg0: i32, %arg1: memref<1x8x16xf32, #tpu.memory_space<vmem>>, %arg2: memref<8x32xf32, #tpu.memory_space<vmem>>, %arg3: memref<16x48xf32, #tpu.memory_space<vmem>>, %arg4: memref<32x48xf32, #tpu.memory_space<vmem>>, %arg5: memref<8x48xf32, #tpu.memory_space<vmem>>, %arg6: memref<48x16xf32, #tpu.memory_space<vmem>>, %arg7: memref<8x16xf32, #tpu.memory_space<vmem>>, %arg8: memref<1x8x16xf32, #tpu.memory_space<vmem>>, %arg9: memref<8x32xf32, #tpu.memory_space<vmem>>, %arg10: memref<8x32xf32, #tpu.memory_space<vmem>>) attributes {dimension_semantics = [#tpu.dimension_semantics<arbitrary>], iteration_bounds = array<i64: 12>, scalar_prefetch = 0 : i64, scratch_operands = 1 : i64, tpu.core_type = #tpu.core_type<tc>, window_params = [{transform_indices = @transform_0, window_bounds = array<i64: 1, 8, 16>}, {pipeline_mode = #tpu.pipeline_mode<synchronous>, transform_indices = @transform_1, window_bounds = array<i64: 8, 32>}, {pipeline_mode = #tpu.pipeline_mode<synchronous>, transform_indices = @transform_2, window_bounds = array<i64: 16, 48>}, {pipeline_mode = #tpu.pipeline_mode<synchronous>, transform_indices = @transform_3, window_bounds = array<i64: 32, 48>}, {pipeline_mode = #tpu.pipeline_mode<synchronous>, transform_indices = @transform_4, window_bounds = array<i64: 8, 48>}, {pipeline_mode = #tpu.pipeline_mode<synchronous>, transform_indices = @transform_5, window_bounds = array<i64: 48, 16>}, {pipeline_mode = #tpu.pipeline_mode<synchronous>, transform_indices = @transform_6, window_bounds = array<i64: 8, 16>}, {transform_indices = @transform_7, window_bounds = array<i64: 1, 8, 16>}, {pipeline_mode = #tpu.pipeline_mode<synchronous>, transform_indices = @transform_8, window_bounds = array<i64: 8, 32>}]} {
    %c0_i32 = arith.constant 0 : i32
    %0 = arith.cmpi eq, %arg0, %c0_i32 : i32
    %1 = arith.extui %0 : i1 to i32
    %c0_i32_0 = arith.constant 0 : i32
    %2 = arith.cmpi ne, %1, %c0_i32_0 : i32
    scf.if %2 {
      %c0_26 = arith.constant 0 : index
      %c0_27 = arith.constant 0 : index
      %33 = vector.load %arg2[%c0_26, %c0_27] : memref<8x32xf32, #tpu.memory_space<vmem>>, vector<8x32xf32>
      %c0_28 = arith.constant 0 : index
      %c0_29 = arith.constant 0 : index
      %34 = vector.load %arg10[%c0_28, %c0_29] : memref<8x32xf32, #tpu.memory_space<vmem>>, vector<8x32xf32>
      tpu.vector_store %arg10[%c0_28, %c0_29], %33 {strides = array<i32>} : memref<8x32xf32, #tpu.memory_space<vmem>>, vector<8x32xf32>,
    } else {
    }
    %c0 = arith.constant 0 : index
    %c0_1 = arith.constant 0 : index
    %c0_2 = arith.constant 0 : index
    %3 = vector.load %arg1[%c0, %c0_1, %c0_2] : memref<1x8x16xf32, #tpu.memory_space<vmem>>, vector<1x8x16xf32>
    %4 = vector.shape_cast %3 : vector<1x8x16xf32> to vector<8x16xf32>
    %c0_3 = arith.constant 0 : index
    %c0_4 = arith.constant 0 : index
    %5 = vector.load %arg10[%c0_3, %c0_4] : memref<8x32xf32, #tpu.memory_space<vmem>>, vector<8x32xf32>
    %c0_5 = arith.constant 0 : index
    %c0_6 = arith.constant 0 : index
    %6 = vector.load %arg3[%c0_5, %c0_6] : memref<16x48xf32, #tpu.memory_space<vmem>>, vector<16x48xf32>
    %cst = arith.constant dense<0.000000e+00> : vector<8x48xf32>
    %7 = tpu.matmul %4, %6, %cst {dimension_numbers = #tpu.dot_dimension_numbers<[1], [0], [0], [1], [0, 0, 1, 1], [], []>} : vector<8x16xf32>, vector<16x48xf32>, vector<8x48xf32> -> vector<8x48xf32>
    %c0_7 = arith.constant 0 : index
    %c0_8 = arith.constant 0 : index
    %8 = vector.load %arg4[%c0_7, %c0_8] : memref<32x48xf32, #tpu.memory_space<vmem>>, vector<32x48xf32>
    %cst_9 = arith.constant dense<0.000000e+00> : vector<8x48xf32>
    %9 = tpu.matmul %5, %8, %cst_9 {dimension_numbers = #tpu.dot_dimension_numbers<[1], [0], [0], [1], [0, 0, 1, 1], [], []>} : vector<8x32xf32>, vector<32x48xf32>, vector<8x48xf32> -> vector<8x48xf32>
    %10 = arith.addf %7, %9 : vector<8x48xf32>
    %c0_10 = arith.constant 0 : index
    %c0_11 = arith.constant 0 : index
    %11 = vector.load %arg5[%c0_10, %c0_11] : memref<8x48xf32, #tpu.memory_space<vmem>>, vector<8x48xf32>
    %12 = arith.addf %10, %11 : vector<8x48xf32>
    %c0_12 = arith.constant 0 : index
    %c0_13 = arith.constant 0 : index
    %13 = vector.load %arg6[%c0_12, %c0_13] : memref<48x16xf32, #tpu.memory_space<vmem>>, vector<48x16xf32>
    %cst_14 = arith.constant dense<0.000000e+00> : vector<8x16xf32>
    %14 = tpu.matmul %12, %13, %cst_14 {dimension_numbers = #tpu.dot_dimension_numbers<[1], [0], [0], [1], [0, 0, 1, 1], [], []>} : vector<8x48xf32>, vector<48x16xf32>, vector<8x16xf32> -> vector<8x16xf32>
    %c0_15 = arith.constant 0 : index
    %c0_16 = arith.constant 0 : index
    %15 = vector.load %arg7[%c0_15, %c0_16] : memref<8x16xf32, #tpu.memory_space<vmem>>, vector<8x16xf32>
    %16 = arith.addf %14, %15 : vector<8x16xf32>
    %cst_17 = arith.constant dense<0xFF800000> : vector<8xf32>
    %17 = vector.multi_reduction <maximumf>, %16, %cst_17 [1] : vector<8x16xf32> to vector<8xf32>
    %18 = vector.shape_cast %17 : vector<8xf32> to vector<8x1xf32>
    %19 = vector.broadcast %18 : vector<8x1xf32> to vector<8x16xf32>
    %20 = arith.subf %16, %19 : vector<8x16xf32>
    %21 = math.exp %20 : vector<8x16xf32>
    %cst_18 = arith.constant dense<0.000000e+00> : vector<8xf32>
    %22 = vector.multi_reduction <add>, %21, %cst_18 [1] : vector<8x16xf32> to vector<8xf32>
    %23 = vector.shape_cast %22 : vector<8xf32> to vector<8x1xf32>
    %24 = math.log %23 : vector<8x1xf32>
    %25 = vector.broadcast %24 : vector<8x1xf32> to vector<8x16xf32>
    %26 = arith.subf %20, %25 : vector<8x16xf32>
    %c0_19 = arith.constant 0 : index
    %c0_20 = arith.constant 0 : index
    %c0_21 = arith.constant 0 : index
    %27 = vector.load %arg8[%c0_19, %c0_20, %c0_21] : memref<1x8x16xf32, #tpu.memory_space<vmem>>, vector<1x8x16xf32>
    %28 = vector.shape_cast %27 : vector<1x8x16xf32> to vector<8x16xf32>
    %29 = vector.shape_cast %26 : vector<8x16xf32> to vector<1x8x16xf32>
    tpu.vector_store %arg8[%c0_19, %c0_20, %c0_21], %29 {strides = array<i32>} : memref<1x8x16xf32, #tpu.memory_space<vmem>>, vector<1x8x16xf32>,
    %30 = vector.extract_strided_slice %12 {offsets = [0, 0], sizes = [8, 32], strides = [1, 1]} : vector<8x48xf32> to vector<8x32xf32>
    %c0_22 = arith.constant 0 : index
    %c0_23 = arith.constant 0 : index
    %31 = vector.load %arg10[%c0_22, %c0_23] : memref<8x32xf32, #tpu.memory_space<vmem>>, vector<8x32xf32>
    tpu.vector_store %arg10[%c0_22, %c0_23], %30 {strides = array<i32>} : memref<8x32xf32, #tpu.memory_space<vmem>>, vector<8x32xf32>,
    %c0_24 = arith.constant 0 : index
    %c0_25 = arith.constant 0 : index
    %32 = vector.load %arg9[%c0_24, %c0_25] : memref<8x32xf32, #tpu.memory_space<vmem>>, vector<8x32xf32>
    tpu.vector_store %arg9[%c0_24, %c0_25], %30 {strides = array<i32>} : memref<8x32xf32, #tpu.memory_space<vmem>>, vector<8x32xf32>,
    return
  }
  func.func @transform_0(%arg0: i32) -> (i32, i32, i32) {
    %c0_i32 = arith.constant 0 : i32
    %c0_i32_0 = arith.constant 0 : i32
    %c0_i32_1 = arith.constant 0 : i32
    return %arg0, %c0_i32, %c0_i32_0 : i32, i32, i32
  }
  func.func @transform_1(%arg0: i32) -> (i32, i32) {
    %c0_i32 = arith.constant 0 : i32
    %c0_i32_0 = arith.constant 0 : i32
    %c0_i32_1 = arith.constant 0 : i32
    return %c0_i32, %c0_i32_0 : i32, i32
  }
  func.func @transform_2(%arg0: i32) -> (i32, i32) {
    %c0_i32 = arith.constant 0 : i32
    %c0_i32_0 = arith.constant 0 : i32
    %c0_i32_1 = arith.constant 0 : i32
    return %c0_i32, %c0_i32_0 : i32, i32
  }
  func.func @transform_3(%arg0: i32) -> (i32, i32) {
    %c0_i32 = arith.constant 0 : i32
    %c0_i32_0 = arith.constant 0 : i32
    %c0_i32_1 = arith.constant 0 : i32
    return %c0_i32, %c0_i32_0 : i32, i32
  }
  func.func @transform_4(%arg0: i32) -> (i32, i32) {
    %c0_i32 = arith.constant 0 : i32
    %c0_i32_0 = arith.constant 0 : i32
    %c0_i32_1 = arith.constant 0 : i32
    return %c0_i32, %c0_i32_0 : i32, i32
  }
  func.func @transform_5(%arg0: i32) -> (i32, i32) {
    %c0_i32 = arith.constant 0 : i32
    %c0_i32_0 = arith.constant 0 : i32
    %c0_i32_1 = arith.constant 0 : i32
    return %c0_i32, %c0_i32_0 : i32, i32
  }
  func.func @transform_6(%arg0: i32) -> (i32, i32) {
    %c0_i32 = arith.constant 0 : i32
    %c0_i32_0 = arith.constant 0 : i32
    %c0_i32_1 = arith.constant 0 : i32
    return %c0_i32, %c0_i32_0 : i32, i32
  }
  func.func @transform_7(%arg0: i32) -> (i32, i32, i32) {
    %c0_i32 = arith.constant 0 : i32
    %c0_i32_0 = arith.constant 0 : i32
    %c0_i32_1 = arith.constant 0 : i32
    return %arg0, %c0_i32, %c0_i32_0 : i32, i32, i32
  }
  func.func @transform_8(%arg0: i32) -> (i32, i32) {
    %c0_i32 = arith.constant 0 : i32
    %c0_i32_0 = arith.constant 0 : i32
    %c0_i32_1 = arith.constant 0 : i32
    return %c0_i32, %c0_i32_0 : i32, i32
  }
}

</mosaic_0001>

<llo_original>
// kernel: tpu_custom_call.1
$region0: #{tpu_custom_call.1}
  #allocation0 [shape = 'u32[]', space=smem, size = 0x4, offset = 0x4, fixed_abs, tag = 'smem constant byte address 0x4 - core index']
  #allocation1 [shape = 'u32[144,128]{1,0:T(1,128)}', space=vmem, size = 0x12000, scoped, tag = 'internal scratch']
  #allocation2 [shape = 'f32[8,32]{1,0:T(8,128)}', space=vmem, size = 0x1000, scoped, tag = 'scratch operand']
  %s0 = inlined_call_operand.hbm [shape: f32[12,8,16], index: 0, kind: input, shape index: {}]
  %s1 = inlined_call_operand.vmem [shape: f32[8,32], index: 1, kind: input, shape index: {}]
  %s2 = inlined_call_operand.vmem [shape: f32[16,48], index: 2, kind: input, shape index: {}]
  %s3 = inlined_call_operand.vmem [shape: f32[32,48], index: 3, kind: input, shape index: {}]
  %s4 = inlined_call_operand.vmem [shape: f32[8,48], index: 4, kind: input, shape index: {}]
  %s5 = inlined_call_operand.vmem [shape: f32[48,16], index: 5, kind: input, shape index: {}]
  %s6 = inlined_call_operand.hbm [shape: f32[8,16], index: 6, kind: input, shape index: {}]
  %s7 = inlined_call_operand.hbm [shape: f32[12,8,16], index: 7, kind: output, shape index: {0}]
  %s8 = inlined_call_operand.hbm [shape: f32[8,32], index: 8, kind: output, shape index: {1}]
  %9 = xla_tuple %s7, %s8
  %s10 = sld [smem:[#allocation0]]
  $region81: #{tpu_custom_call.1} parent=0
    _
  %s12 = ssub.s32 1, %s10
  %s13 = scalar_select 0, %s12, %s10
  $region1: #{tpu_custom_call.1} parent=0
    #allocation3 [shape = 'u8[8192]{0}', space=vmem, size = 0x2000, scoped, tag = 'input window, operand 0']
    #allocation4 [shape = 's32[2]{0}', space=sflag, size = 0x8, scoped, tag = 'scoped memory for tpu_custom_call.1']
    #allocation5 [shape = 's32[2]{0}', space=sflag, size = 0x8, scoped, tag = 'scoped memory for tpu_custom_call.1']
    #allocation6 [shape = 'u8[4096]{0}', space=vmem, size = 0x1000, scoped, tag = 'input window, operand 6, single buffered']
    #allocation7 [shape = 's32[1]{0}', space=sflag, size = 0x4, scoped, tag = 'scoped memory for tpu_custom_call.1']
    #allocation8 [shape = 'u8[8192]{0}', space=vmem, size = 0x2000, scoped, tag = 'output window, operand 0']
    #allocation9 [shape = 'u8[4096]{0}', space=vmem, size = 0x1000, scoped, tag = 'output window, operand 1, single buffered']
    #allocation10 [shape = 's32[1]{0}', space=sflag, size = 0x4, scoped, tag = 'scoped memory for tpu_custom_call.1']
    %14 = vsyncpa [#allocation4], 0
    %s15 = scalar_lea.sflag [#allocation4], 1
    %16 = vsyncpa %s15, 0
    %17 = vsyncpa [#allocation7], 0
    %18 = vsyncpa [#allocation5], 0
    %s19 = scalar_lea.sflag [#allocation5], 1
    %20 = vsyncpa %s19, 0
    %21 = vsyncpa [#allocation10], 0
    loop: start=0, step=1, limit=14
    $region2: #{tpu_custom_call.1} parent=1 // loop_pre_header
      _
    $region3: #{tpu_custom_call.1} parent=1 // loop_header
      %s23 = sphi 0, %s27
      %p24 = scmp.ge.s32.totalorder %s23, 14
      %s33 = sphi 0, %s35
      %s36 = sphi 0, %s33
      %s37 = sphi 0, %s36
      %s53 = sphi 0, %s37
      %s57 = sphi 0, %s57
      %s59 = sphi 0, %s57
      %s60 = sphi 0, %s59
      %s74 = sphi 0, %s60
      %s78 = sphi 0, %s78
      %s80 = sphi 0, %s78
      %s81 = sphi 0, %s80
      %s95 = sphi 0, %s81
      %s99 = sphi 0, %s99
      %s101 = sphi 0, %s99
      %s102 = sphi 0, %s101
      %s116 = sphi 0, %s102
      %s120 = sphi 0, %s120
      %s122 = sphi 0, %s120
      %s123 = sphi 0, %s122
      %s137 = sphi 0, %s123
      %s141 = sphi 0, %s141
      %s143 = sphi 0, %s141
      %s144 = sphi 0, %s143
      %s158 = sphi 0, %s144
      %s162 = sphi 0, %s162
      %s164 = sphi 0, %s162
      %s165 = sphi 0, %s164
      %s179 = sphi 0, %s165
      %s185 = sphi 0, %s187
      %s188 = sphi 0, %s185
      %s189 = sphi 0, %s188
      %s205 = sphi 0, %s189
      %s209 = sphi 0, %s209
      %s211 = sphi 0, %s209
      %s212 = sphi 0, %s211
      %s226 = sphi 0, %s212
    $region4: #{tpu_custom_call.1} parent=1 // loop_header_branch
      %26 = sbr.rel (%p24) target = $region8
    $region5: #{tpu_custom_call.1} parent=1 // loop_body
      %s28 = ssub.s32 %s23, 1
      %s29 = ssub.s32 %s23, 2
      %s30 = sadd.s32 %s23, 1
      %s31 = ssub.s32 %s23, %s30
      %p32 = scmp.eq.s32.totalorder %s31, 0
      %s34 = sadd.s32 %s33, 1
      %s35 = scalar_select %p32, %s33, %s34
      %p38 = pneg %p32
      %p39 = scmp.eq.s32.totalorder %s23, 11
      %p40 = por %p38, %p39
      %p41 = scmp.ne.s32.totalorder %s33, %s36
      %p42 = scmp.eq.s32.totalorder %s23, 0
      %p43 = por %p41, %p42
      %p44 = scmp.ne.s32.totalorder %s33, %s36
      %p45 = scmp.eq.s32.totalorder %s28, 11
      %p46 = por %p44, %p45
      %p47 = scmp.ne.s32.totalorder %s36, %s37
      %p48 = scmp.eq.s32.totalorder %s28, 0
      %p49 = por %p47, %p48
      %p50 = scmp.ne.s32.totalorder %s36, %s37
      %p51 = scmp.eq.s32.totalorder %s29, 11
      %p52 = por %p50, %p51
      %p54 = scmp.ne.s32.totalorder %s37, %s53
      %p55 = scmp.eq.s32.totalorder %s29, 0
      %p56 = por %p54, %p55
      %s58 = sadd.s32 %s57, 1
      %p61 = scmp.eq.s32.totalorder %s23, 11
      %p62 = scmp.ne.s32.totalorder %s57, %s59
      %p63 = scmp.eq.s32.totalorder %s23, 0
      %p64 = por %p62, %p63
      %p65 = scmp.ne.s32.totalorder %s57, %s59
      %p66 = scmp.eq.s32.totalorder %s28, 11
      %p67 = por %p65, %p66
      %p68 = scmp.ne.s32.totalorder %s59, %s60
      %p69 = scmp.eq.s32.totalorder %s28, 0
      %p70 = por %p68, %p69
      %p71 = scmp.ne.s32.totalorder %s59, %s60
      %p72 = scmp.eq.s32.totalorder %s29, 11
      %p73 = por %p71, %p72
      %p75 = scmp.ne.s32.totalorder %s60, %s74
      %p76 = scmp.eq.s32.totalorder %s29, 0
      %p77 = por %p75, %p76
      %s79 = sadd.s32 %s78, 1
      %p82 = scmp.eq.s32.totalorder %s23, 11
      %p83 = scmp.ne.s32.totalorder %s78, %s80
      %p84 = scmp.eq.s32.totalorder %s23, 0
      %p85 = por %p83, %p84
      %p86 = scmp.ne.s32.totalorder %s78, %s80
      %p87 = scmp.eq.s32.totalorder %s28, 11
      %p88 = por %p86, %p87
      %p89 = scmp.ne.s32.totalorder %s80, %s81
      %p90 = scmp.eq.s32.totalorder %s28, 0
      %p91 = por %p89, %p90
      %p92 = scmp.ne.s32.totalorder %s80, %s81
      %p93 = scmp.eq.s32.totalorder %s29, 11
      %p94 = por %p92, %p93
      %p96 = scmp.ne.s32.totalorder %s81, %s95
      %p97 = scmp.eq.s32.totalorder %s29, 0
      %p98 = por %p96, %p97
      %s100 = sadd.s32 %s99, 1
      %p103 = scmp.eq.s32.totalorder %s23, 11
      %p104 = scmp.ne.s32.totalorder %s99, %s101
      %p105 = scmp.eq.s32.totalorder %s23, 0
      %p106 = por %p104, %p105
      %p107 = scmp.ne.s32.totalorder %s99, %s101
      %p108 = scmp.eq.s32.totalorder %s28, 11
      %p109 = por %p107, %p108
      %p110 = scmp.ne.s32.totalorder %s101, %s102
      %p111 = scmp.eq.s32.totalorder %s28, 0
      %p112 = por %p110, %p111
      %p113 = scmp.ne.s32.totalorder %s101, %s102
      %p114 = scmp.eq.s32.totalorder %s29, 11
      %p115 = por %p113, %p114
      %p117 = scmp.ne.s32.totalorder %s102, %s116
      %p118 = scmp.eq.s32.totalorder %s29, 0
      %p119 = por %p117, %p118
      %s121 = sadd.s32 %s120, 1
      %p124 = scmp.eq.s32.totalorder %s23, 11
      %p125 = scmp.ne.s32.totalorder %s120, %s122
      %p126 = scmp.eq.s32.totalorder %s23, 0
      %p127 = por %p125, %p126
      %p128 = scmp.ne.s32.totalorder %s120, %s122
      %p129 = scmp.eq.s32.totalorder %s28, 11
      %p130 = por %p128, %p129
      %p131 = scmp.ne.s32.totalorder %s122, %s123
      %p132 = scmp.eq.s32.totalorder %s28, 0
      %p133 = por %p131, %p132
      %p134 = scmp.ne.s32.totalorder %s122, %s123
      %p135 = scmp.eq.s32.totalorder %s29, 11
      %p136 = por %p134, %p135
      %p138 = scmp.ne.s32.totalorder %s123, %s137
      %p139 = scmp.eq.s32.totalorder %s29, 0
      %p140 = por %p138, %p139
      %s142 = sadd.s32 %s141, 1
      %p145 = scmp.eq.s32.totalorder %s23, 11
      %p146 = scmp.ne.s32.totalorder %s141, %s143
      %p147 = scmp.eq.s32.totalorder %s23, 0
      %p148 = por %p146, %p147
      %p149 = scmp.ne.s32.totalorder %s141, %s143
      %p150 = scmp.eq.s32.totalorder %s28, 11
      %p151 = por %p149, %p150
      %p152 = scmp.ne.s32.totalorder %s143, %s144
      %p153 = scmp.eq.s32.totalorder %s28, 0
      %p154 = por %p152, %p153
      %p155 = scmp.ne.s32.totalorder %s143, %s144
      %p156 = scmp.eq.s32.totalorder %s29, 11
      %p157 = por %p155, %p156
      %p159 = scmp.ne.s32.totalorder %s144, %s158
      %p160 = scmp.eq.s32.totalorder %s29, 0
      %p161 = por %p159, %p160
      %s163 = sadd.s32 %s162, 1
      %p166 = scmp.eq.s32.totalorder %s23, 11
      %p167 = scmp.ne.s32.totalorder %s162, %s164
      %p168 = scmp.eq.s32.totalorder %s23, 0
      %p169 = por %p167, %p168
      %p170 = scmp.ne.s32.totalorder %s162, %s164
      %p171 = scmp.eq.s32.totalorder %s28, 11
      %p172 = por %p170, %p171
      %p173 = scmp.ne.s32.totalorder %s164, %s165
      %p174 = scmp.eq.s32.totalorder %s28, 0
      %p175 = por %p173, %p174
      %p176 = scmp.ne.s32.totalorder %s164, %s165
      %p177 = scmp.eq.s32.totalorder %s29, 11
      %p178 = por %p176, %p177
      %p180 = scmp.ne.s32.totalorder %s165, %s179
      %p181 = scmp.eq.s32.totalorder %s29, 0
      %p182 = por %p180, %p181
      %s183 = ssub.s32 %s23, %s30
      %p184 = scmp.eq.s32.totalorder %s183, 0
      %s186 = sadd.s32 %s185, 1
      %s187 = scalar_select %p184, %s185, %s186
      %p190 = pneg %p184
      %p191 = scmp.eq.s32.totalorder %s23, 11
      %p192 = por %p190, %p191
      %p193 = scmp.ne.s32.totalorder %s185, %s188
      %p194 = scmp.eq.s32.totalorder %s23, 0
      %p195 = por %p193, %p194
      %p196 = scmp.ne.s32.totalorder %s185, %s188
      %p197 = scmp.eq.s32.totalorder %s28, 11
      %p198 = por %p196, %p197
      %p199 = scmp.ne.s32.totalorder %s188, %s189
      %p200 = scmp.eq.s32.totalorder %s28, 0
      %p201 = por %p199, %p200
      %p202 = scmp.ne.s32.totalorder %s188, %s189
      %p203 = scmp.eq.s32.totalorder %s29, 11
      %p204 = por %p202, %p203
      %p206 = scmp.ne.s32.totalorder %s189, %s205
      %p207 = scmp.eq.s32.totalorder %s29, 0
      %p208 = por %p206, %p207
      %s210 = sadd.s32 %s209, 1
      %p213 = scmp.eq.s32.totalorder %s23, 11
      %p214 = scmp.ne.s32.totalorder %s209, %s211
      %p215 = scmp.eq.s32.totalorder %s23, 0
      %p216 = por %p214, %p215
      %p217 = scmp.ne.s32.totalorder %s209, %s211
      %p218 = scmp.eq.s32.totalorder %s28, 11
      %p219 = por %p217, %p218
      %p220 = scmp.ne.s32.totalorder %s211, %s212
      %p221 = scmp.eq.s32.totalorder %s28, 0
      %p222 = por %p220, %p221
      %p223 = scmp.ne.s32.totalorder %s211, %s212
      %p224 = scmp.eq.s32.totalorder %s29, 11
      %p225 = por %p223, %p224
      %p227 = scmp.ne.s32.totalorder %s212, %s226
      %p228 = scmp.eq.s32.totalorder %s29, 0
      %p229 = por %p227, %p228
      %p230 = scmp.le.s32.totalorder 1, %s23
      %p231 = scmp.lt.s32.totalorder %s23, 13
      %p232 = pnand %p230, %p231
      %p233 = pneg %p232
      // Predicated region
      $region9: #{tpu_custom_call.1} parent=5 // pred_check
        _
      $region10: #{tpu_custom_call.1} parent=5 // pred_check_branch
        %235 = sbr.rel (%p232) target = $region12
      $region11: #{tpu_custom_call.1} parent=5 // pred_region
        %s236 = ssub.s32 %s23, 1
        // Predicated region
        $region13: #{tpu_custom_call.1} parent=11 // pred_check
          %p237 = pneg %p70
        $region14: #{tpu_custom_call.1} parent=11 // pred_check_branch
          %239 = sbr.rel (%p237) target = $region16
        $region15: #{tpu_custom_call.1} parent=11 // pred_region
          _
        $region16: #{tpu_custom_call.1} parent=11 // pred_fallthru
          _
        // Predicated region
        $region17: #{tpu_custom_call.1} parent=11 // pred_check
          %p240 = pneg %p91
        $region18: #{tpu_custom_call.1} parent=11 // pred_check_branch
          %242 = sbr.rel (%p240) target = $region20
        $region19: #{tpu_custom_call.1} parent=11 // pred_region
          _
        $region20: #{tpu_custom_call.1} parent=11 // pred_fallthru
          _
        // Predicated region
        $region21: #{tpu_custom_call.1} parent=11 // pred_check
          %p243 = pneg %p112
        $region22: #{tpu_custom_call.1} parent=11 // pred_check_branch
          %245 = sbr.rel (%p243) target = $region24
        $region23: #{tpu_custom_call.1} parent=11 // pred_region
          _
        $region24: #{tpu_custom_call.1} parent=11 // pred_fallthru
          _
        // Predicated region
        $region25: #{tpu_custom_call.1} parent=11 // pred_check
          %p246 = pneg %p133
        $region26: #{tpu_custom_call.1} parent=11 // pred_check_branch
          %248 = sbr.rel (%p246) target = $region28
        $region27: #{tpu_custom_call.1} parent=11 // pred_region
          _
        $region28: #{tpu_custom_call.1} parent=11 // pred_fallthru
          _
        // Predicated region
        $region29: #{tpu_custom_call.1} parent=11 // pred_check
          %p249 = pneg %p154
        $region30: #{tpu_custom_call.1} parent=11 // pred_check_branch
          %251 = sbr.rel (%p249) target = $region32
        $region31: #{tpu_custom_call.1} parent=11 // pred_region
          _
        $region32: #{tpu_custom_call.1} parent=11 // pred_fallthru
          _
        // Predicated region
        $region33: #{tpu_custom_call.1} parent=11 // pred_check
          %p252 = pneg %p175
        $region34: #{tpu_custom_call.1} parent=11 // pred_check_branch
          %254 = sbr.rel (%p252) target = $region36
        $region35: #{tpu_custom_call.1} parent=11 // pred_region
          %s256 = ssub.s32 128, 128
          %257 = vsyncadd [#allocation7], %s256
          %s259 = sshll.u32 [#allocation6], 4
          %s260 = int_to_ptr.vmem [resolvable:$true] %s259
          %262 = dma.hbm_to_vmem [thread:$0]  %s6, 128, %s260, [#allocation7]
        $region36: #{tpu_custom_call.1} parent=11 // pred_fallthru
          _
      $region12: #{tpu_custom_call.1} parent=5 // pred_fallthru
        _
      %p263 = scmp.lt.s32.totalorder %s23, 12
      // Predicated region
      $region37: #{tpu_custom_call.1} parent=5 // pred_check
        %p264 = pneg %p263
      $region38: #{tpu_custom_call.1} parent=5 // pred_check_branch
        %266 = sbr.rel (%p264) target = $region40
      $region39: #{tpu_custom_call.1} parent=5 // pred_region
        // Predicated region
        $region41: #{tpu_custom_call.1} parent=39 // pred_check
          %p267 = pneg %p43
        $region42: #{tpu_custom_call.1} parent=39 // pred_check_branch
          %269 = sbr.rel (%p267) target = $region44
        $region43: #{tpu_custom_call.1} parent=39 // pred_region
          %s270 = sand.u32 %s33, 1
          %s271 = scalar_lea.sflag [#allocation4], %s270
          %s272 = sand.u32 %s33, 1
          %s273 = smul.addr %s272, 8
          %s274 = scalar_lea.vmem [#allocation3], %s273
          %s276 = ssub.s32 128, 128
          %277 = vsyncadd %s271, %s276
          %s278 = smul.addr %s23, 128
          %s279 = scalar_lea.hbm %s0, %s278
          %s281 = sshll.u32 %s274, 4
          %s282 = int_to_ptr.vmem [resolvable:$true] %s281
          %284 = dma.hbm_to_vmem [thread:$0]  %s279, 128, %s282, %s271
        $region44: #{tpu_custom_call.1} parent=39 // pred_fallthru
          _
      $region40: #{tpu_custom_call.1} parent=5 // pred_fallthru
        _
      %p285 = scmp.le.s32.totalorder 1, %s23
      %p286 = scmp.lt.s32.totalorder %s23, 13
      %p287 = pnand %p285, %p286
      %p288 = pneg %p287
      // Predicated region
      $region45: #{tpu_custom_call.1} parent=5 // pred_check
        _
      $region46: #{tpu_custom_call.1} parent=5 // pred_check_branch
        %290 = sbr.rel (%p287) target = $region48
      $region47: #{tpu_custom_call.1} parent=5 // pred_region
        %s291 = ssub.s32 %s23, 1
        %s292 = sand.u32 %s36, 1
        %s293 = scalar_lea.sflag [#allocation4], %s292
        %s294 = sand.u32 %s36, 1
        %s295 = smul.addr %s294, 8
        %s296 = scalar_lea.vmem [#allocation3], %s295
        // Predicated region
        $region49: #{tpu_custom_call.1} parent=47 // pred_check
          %p297 = pneg %p49
        $region50: #{tpu_custom_call.1} parent=47 // pred_check_branch
          %299 = sbr.rel (%p297) target = $region52
        $region51: #{tpu_custom_call.1} parent=47 // pred_region
          %300 = dma.done %s293, 128
        $region52: #{tpu_custom_call.1} parent=47 // pred_fallthru
          _
        // Predicated region
        $region53: #{tpu_custom_call.1} parent=47 // pred_check
          %p301 = pneg %p175
        $region54: #{tpu_custom_call.1} parent=47 // pred_check_branch
          %303 = sbr.rel (%p301) target = $region56
        $region55: #{tpu_custom_call.1} parent=47 // pred_region
          %304 = dma.done [#allocation7], 128
        $region56: #{tpu_custom_call.1} parent=47 // pred_fallthru
          _
        %s305 = sand.u32 %s36, 1
        %s306 = scalar_lea.sflag [#allocation4], %s305
        %s307 = sand.u32 %s36, 1
        %s308 = smul.addr %s307, 8
        %s309 = scalar_lea.vmem [#allocation3], %s308
        %p310 = pneg %p49
        %p311 = pneg %p46
        %p312 = pneg %p70
        %p313 = pneg %p67
        %p314 = pneg %p91
        %p315 = pneg %p88
        %p316 = pneg %p112
        %p317 = pneg %p109
        %p318 = pneg %p133
        %p319 = pneg %p130
        %p320 = pneg %p154
        %p321 = pneg %p151
        %p322 = pneg %p175
        %p323 = pneg %p172
        %p324 = pneg %p201
        %p325 = pneg %p198
        %s326 = sand.u32 %s188, 1
        %s327 = scalar_lea.sflag [#allocation5], %s326
        %s328 = sand.u32 %s188, 1
        %s329 = smul.addr %s328, 8
        %s330 = scalar_lea.vmem [#allocation8], %s329
        %p331 = pneg %p222
        %p332 = pneg %p219
        %p333 = scmp.eq.s32.totalorder %s28, 0
        // Predicated region
        $region57: #{tpu_custom_call.1} parent=47 // pred_check
          %p334 = pneg %p333
        $region58: #{tpu_custom_call.1} parent=47 // pred_check_branch
          %336 = sbr.rel (%p334) target = $region60
        $region59: #{tpu_custom_call.1} parent=47 // pred_region
          %v337 = vld [vmem:[%s1] sm:$0xff]
          %vm338 = vcmask 261120
          %339 = vst.msk [vmem:[#allocation2] sm:$0xff] %vm338, %v337
        $region60: #{tpu_custom_call.1} parent=47 // pred_fallthru
          _
        %v340 = vld [vmem:[%s296] sm:$0xff]
        %v341 = vld [vmem:[#allocation2] sm:$0xff]
        %v342 = vld [vmem:[%s2] sm:$0xff]
        %v343 = vld [vmem:[%s2 + $0x8] sm:$0xff]
        %v344 = vld [vmem:[%s3] sm:$0xff]
        %v345 = vld [vmem:[%s3 + $0x8] sm:$0xff]
        %v346 = vld [vmem:[%s3 + $0x10] sm:$0xff]
        %v347 = vld [vmem:[%s3 + $0x18] sm:$0xff]
        %vm348 = vcmask 261120
        %v350 = vsel %vm348, %v341, 0
        %352 = vmatprep.subr.mxu0 0.0
        %353 = vmatpush1.msra.mxu0 %v344
        %354 = vmatprep.subr.mxu0 0.0
        %355 = vmatpush1.msra.mxu0 %v345
        %356 = vmatprep.subr.mxu0 0.0
        %357 = vmatpush1.msra.mxu0 %v346
        %358 = vmatprep.subr.mxu0 0.0
        %359 = vmatpush1.msra.mxu0 %v347
        %360 = vmatprep.subr.mxu0 0.0
        %361 = vmatpush1.msra.mxu0 0.0
        %362 = vmatprep.subr.mxu0 0.0
        %363 = vmatpush1.msra.mxu0 0.0
        %364 = vmatprep.subr.mxu0 0.0
        %365 = vmatpush1.msra.mxu0 0.0
        %366 = vmatprep.subr.mxu0 0.0
        %367 = vmatpush1.msra.mxu0 0.0
        %368 = vmatprep.subr.mxu0 0.0
        %369 = vmatpush1.msra.mxu0 0.0
        %370 = vmatprep.subr.mxu0 0.0
        %371 = vmatpush1.msra.mxu0 0.0
        %372 = vmatprep.subr.mxu0 0.0
        %373 = vmatpush1.msra.mxu0 0.0
        %374 = vmatprep.subr.mxu0 0.0
        %375 = vmatpush1.msra.mxu0 0.0
        %376 = vmatprep.subr.mxu0 0.0
        %377 = vmatpush1.msra.mxu0 0.0
        %378 = vmatprep.subr.mxu0 0.0
        %379 = vmatpush1.msra.mxu0 0.0
        %380 = vmatprep.subr.mxu0 0.0
        %381 = vmatpush1.msra.mxu0 0.0
        %382 = vmatprep.subr.mxu0 0.0
        %383 = vmatpush1.msra.mxu0 0.0
        %384 = vmatprep.subr.mxu0 0.0
        %385 = vmatpush1.msra.mxu0 0.0
        %386 = vmatprep.subr.mxu0 0.0
        %387 = vmatpush1.msra.mxu0 0.0
        %388 = vmatprep.subr.mxu0 0.0
        %389 = vmatpush1.msra.mxu0 0.0
        %390 = vmatprep.subr.mxu0 0.0
        %391 = vmatpush1.msra.mxu0 0.0
        %392 = vmatprep.subr.mxu0 0.0
        %393 = vmatpush1.msra.mxu0 0.0
        %394 = vmatprep.subr.mxu0 0.0
        %395 = vmatpush1.msra.mxu0 0.0
        %396 = vmatprep.subr.mxu0 0.0
        %397 = vmatpush1.msra.mxu0 0.0
        %398 = vmatprep.subr.mxu0 0.0
        %399 = vmatpush1.msra.mxu0 0.0
        %400 = vmatprep.subr.mxu0 0.0
        %401 = vmatpush1.msra.mxu0 0.0
        %402 = vmatprep.subr.mxu0 0.0
        %403 = vmatpush1.msra.mxu0 0.0
        %404 = vmatprep.subr.mxu0 0.0
        %405 = vmatpush1.msra.mxu0 0.0
        %406 = vmatprep.subr.mxu0 0.0
        %407 = vmatpush1.msra.mxu0 0.0
        %408 = vmatprep.subr.mxu0 0.0
        %409 = vmatpush1.msra.mxu0 0.0
        %410 = vmatprep.subr.mxu0 0.0
        %411 = vmatpush1.msra.mxu0 0.0
        %412 = vmatprep.subr.mxu0 0.0
        %413 = vmatpush1.msra.mxu0 0.0
        %414 = vmatprep.subr.mxu0 0.0
        %415 = vmatpush1.msra.mxu0 0.0
        %416 = vmatprep.mubr.f32.mxu0 0.0
        %417 = vmatmul.mubr.f32.gmra.mrb[0].mxu0 %v350
        %v418 = vpop.f32.mrb[0].mxu0
        %v419 = vadd.f32 0.0, %v418
        %v420 = vpop.f32.mrb[0].mxu0
        %421 = vdwg.mxu0
        %vm422 = vcmask 130048
        %v424 = vsel %vm422, %v340, 0
        %426 = vmatprep.subr.mxu0 0.0
        %427 = vmatpush1.msra.mxu0 %v342
        %428 = vmatprep.subr.mxu0 0.0
        %429 = vmatpush1.msra.mxu0 %v343
        %430 = vmatprep.subr.mxu0 0.0
        %431 = vmatpush1.msra.mxu0 0.0
        %432 = vmatprep.subr.mxu0 0.0
        %433 = vmatpush1.msra.mxu0 0.0
        %434 = vmatprep.subr.mxu0 0.0
        %435 = vmatpush1.msra.mxu0 0.0
        %436 = vmatprep.subr.mxu0 0.0
        %437 = vmatpush1.msra.mxu0 0.0
        %438 = vmatprep.subr.mxu0 0.0
        %439 = vmatpush1.msra.mxu0 0.0
        %440 = vmatprep.subr.mxu0 0.0
        %441 = vmatpush1.msra.mxu0 0.0
        %442 = vmatprep.subr.mxu0 0.0
        %443 = vmatpush1.msra.mxu0 0.0
        %444 = vmatprep.subr.mxu0 0.0
        %445 = vmatpush1.msra.mxu0 0.0
        %446 = vmatprep.subr.mxu0 0.0
        %447 = vmatpush1.msra.mxu0 0.0
        %448 = vmatprep.subr.mxu0 0.0
        %449 = vmatpush1.msra.mxu0 0.0
        %450 = vmatprep.subr.mxu0 0.0
        %451 = vmatpush1.msra.mxu0 0.0
        %452 = vmatprep.subr.mxu0 0.0
        %453 = vmatpush1.msra.mxu0 0.0
        %454 = vmatprep.subr.mxu0 0.0
        %455 = vmatpush1.msra.mxu0 0.0
        %456 = vmatprep.subr.mxu0 0.0
        %457 = vmatpush1.msra.mxu0 0.0
        %458 = vmatprep.subr.mxu0 0.0
        %459 = vmatpush1.msra.mxu0 0.0
        %460 = vmatprep.subr.mxu0 0.0
        %461 = vmatpush1.msra.mxu0 0.0
        %462 = vmatprep.subr.mxu0 0.0
        %463 = vmatpush1.msra.mxu0 0.0
        %464 = vmatprep.subr.mxu0 0.0
        %465 = vmatpush1.msra.mxu0 0.0
        %466 = vmatprep.subr.mxu0 0.0
        %467 = vmatpush1.msra.mxu0 0.0
        %468 = vmatprep.subr.mxu0 0.0
        %469 = vmatpush1.msra.mxu0 0.0
        %470 = vmatprep.subr.mxu0 0.0
        %471 = vmatpush1.msra.mxu0 0.0
        %472 = vmatprep.subr.mxu0 0.0
        %473 = vmatpush1.msra.mxu0 0.0
        %474 = vmatprep.subr.mxu0 0.0
        %475 = vmatpush1.msra.mxu0 0.0
        %476 = vmatprep.subr.mxu0 0.0
        %477 = vmatpush1.msra.mxu0 0.0
        %478 = vmatprep.subr.mxu0 0.0
        %479 = vmatpush1.msra.mxu0 0.0
        %480 = vmatprep.subr.mxu0 0.0
        %481 = vmatpush1.msra.mxu0 0.0
        %482 = vmatprep.subr.mxu0 0.0
        %483 = vmatpush1.msra.mxu0 0.0
        %484 = vmatprep.subr.mxu0 0.0
        %485 = vmatpush1.msra.mxu0 0.0
        %486 = vmatprep.subr.mxu0 0.0
        %487 = vmatpush1.msra.mxu0 0.0
        %488 = vmatprep.subr.mxu0 0.0
        %489 = vmatpush1.msra.mxu0 0.0
        %490 = vmatprep.mubr.f32.mxu0 0.0
        %491 = vmatmul.mubr.f32.gmra.mrb[0].mxu0 %v424
        %v492 = vpop.f32.mrb[0].mxu0
        %v493 = vadd.f32 %v419, %v492
        %v494 = vpop.f32.mrb[0].mxu0
        %495 = vdwg.mxu0
        %v496 = vld [vmem:[%s4] sm:$0xff]
        %v497 = vadd.f32 %v493, %v496
        %v498 = vld [vmem:[%s5] sm:$0xff]
        %v499 = vld [vmem:[%s5 + $0x8] sm:$0xff]
        %v500 = vld [vmem:[%s5 + $0x10] sm:$0xff]
        %v501 = vld [vmem:[%s5 + $0x18] sm:$0xff]
        %v502 = vld [vmem:[%s5 + $0x20] sm:$0xff]
        %v503 = vld [vmem:[%s5 + $0x28] sm:$0xff]
        %v504 = vld [vmem:[#allocation6] sm:$0xff]
        %vm505 = vcmask 392192
        %v507 = vsel %vm505, %v497, 0
        %509 = vmatprep.subr.mxu0 0.0
        %510 = vmatpush1.msra.mxu0 %v498
        %511 = vmatprep.subr.mxu0 0.0
        %512 = vmatpush1.msra.mxu0 %v499
        %513 = vmatprep.subr.mxu0 0.0
        %514 = vmatpush1.msra.mxu0 %v500
        %515 = vmatprep.subr.mxu0 0.0
        %516 = vmatpush1.msra.mxu0 %v501
        %517 = vmatprep.subr.mxu0 0.0
        %518 = vmatpush1.msra.mxu0 %v502
        %519 = vmatprep.subr.mxu0 0.0
        %520 = vmatpush1.msra.mxu0 %v503
        %521 = vmatprep.subr.mxu0 0.0
        %522 = vmatpush1.msra.mxu0 0.0
        %523 = vmatprep.subr.mxu0 0.0
        %524 = vmatpush1.msra.mxu0 0.0
        %525 = vmatprep.subr.mxu0 0.0
        %526 = vmatpush1.msra.mxu0 0.0
        %527 = vmatprep.subr.mxu0 0.0
        %528 = vmatpush1.msra.mxu0 0.0
        %529 = vmatprep.subr.mxu0 0.0
        %530 = vmatpush1.msra.mxu0 0.0
        %531 = vmatprep.subr.mxu0 0.0
        %532 = vmatpush1.msra.mxu0 0.0
        %533 = vmatprep.subr.mxu0 0.0
        %534 = vmatpush1.msra.mxu0 0.0
        %535 = vmatprep.subr.mxu0 0.0
        %536 = vmatpush1.msra.mxu0 0.0
        %537 = vmatprep.subr.mxu0 0.0
        %538 = vmatpush1.msra.mxu0 0.0
        %539 = vmatprep.subr.mxu0 0.0
        %540 = vmatpush1.msra.mxu0 0.0
        %541 = vmatprep.subr.mxu0 0.0
        %542 = vmatpush1.msra.mxu0 0.0
        %543 = vmatprep.subr.mxu0 0.0
        %544 = vmatpush1.msra.mxu0 0.0
        %545 = vmatprep.subr.mxu0 0.0
        %546 = vmatpush1.msra.mxu0 0.0
        %547 = vmatprep.subr.mxu0 0.0
        %548 = vmatpush1.msra.mxu0 0.0
        %549 = vmatprep.subr.mxu0 0.0
        %550 = vmatpush1.msra.mxu0 0.0
        %551 = vmatprep.subr.mxu0 0.0
        %552 = vmatpush1.msra.mxu0 0.0
        %553 = vmatprep.subr.mxu0 0.0
        %554 = vmatpush1.msra.mxu0 0.0
        %555 = vmatprep.subr.mxu0 0.0
        %556 = vmatpush1.msra.mxu0 0.0
        %557 = vmatprep.subr.mxu0 0.0
        %558 = vmatpush1.msra.mxu0 0.0
        %559 = vmatprep.subr.mxu0 0.0
        %560 = vmatpush1.msra.mxu0 0.0
        %561 = vmatprep.subr.mxu0 0.0
        %562 = vmatpush1.msra.mxu0 0.0
        %563 = vmatprep.subr.mxu0 0.0
        %564 = vmatpush1.msra.mxu0 0.0
        %565 = vmatprep.subr.mxu0 0.0
        %566 = vmatpush1.msra.mxu0 0.0
        %567 = vmatprep.subr.mxu0 0.0
        %568 = vmatpush1.msra.mxu0 0.0
        %569 = vmatprep.subr.mxu0 0.0
        %570 = vmatpush1.msra.mxu0 0.0
        %571 = vmatprep.subr.mxu0 0.0
        %572 = vmatpush1.msra.mxu0 0.0
        %573 = vmatprep.mubr.f32.mxu0 0.0
        %574 = vmatmul.mubr.f32.gmra.mrb[0].mxu0 %v507
        %v575 = vpop.f32.mrb[0].mxu0
        %v576 = vadd.f32 %v504, %v575
        %v577 = vpop.f32.mrb[0].mxu0
        %578 = vdwg.mxu0
        %v579 = vsel %vm422, %v576, -inf
        %580 = vmax.xlane.f32.xlu0 %v579
        %v581 = vpop.xlane.xlu0 %580
        %v582 = vsub.f32 %v576, %v581
        %v583 = vmul.f32 %v582, 1.442695
        %v584 = vpow.pop %v583
        %v585 = vsel %vm422, %v584, 0.0
        %586 = vadd.xlane.f32.xlu0 %v585
        %v587 = vpop.xlane.xlu0 %586
        %v588 = vlog2.pop %v587
        %v589 = vmul.f32 %v588, 0.6931472
        %v590 = vsub.f32 %v582, %v589
        %591 = vst.msk [vmem:[%s330] sm:$0xff] %vm422, %v590
        %592 = vst.msk [vmem:[#allocation2] sm:$0xff] %vm348, %v497
        %593 = vst.msk [vmem:[#allocation9] sm:$0xff] %vm348, %v497
        %s594 = sand.u32 %s188, 1
        %s595 = scalar_lea.sflag [#allocation5], %s594
        %s596 = sand.u32 %s188, 1
        %s597 = smul.addr %s596, 8
        %s598 = scalar_lea.vmem [#allocation8], %s597
        // Predicated region
        $region61: #{tpu_custom_call.1} parent=47 // pred_check
          %p599 = pneg %p198
        $region62: #{tpu_custom_call.1} parent=47 // pred_check_branch
          %601 = sbr.rel (%p599) target = $region64
        $region63: #{tpu_custom_call.1} parent=47 // pred_region
          %s603 = ssub.s32 128, 128
          %604 = vsyncadd %s595, %s603
          %s605 = smul.addr %s28, 128
          %s606 = scalar_lea.hbm %s7, %s605
          %s608 = sshll.u32 %s598, 4
          %s609 = int_to_ptr.vmem [resolvable:$true] %s608
          %611 = dma.vmem_to_hbm [thread:$0]  %s609, 128, %s606, %s595
        $region64: #{tpu_custom_call.1} parent=47 // pred_fallthru
          _
        // Predicated region
        $region65: #{tpu_custom_call.1} parent=47 // pred_check
          %p612 = pneg %p219
        $region66: #{tpu_custom_call.1} parent=47 // pred_check_branch
          %614 = sbr.rel (%p612) target = $region68
        $region67: #{tpu_custom_call.1} parent=47 // pred_region
          %s616 = ssub.s32 128, 128
          %617 = vsyncadd [#allocation10], %s616
          %s619 = sshll.u32 [#allocation9], 4
          %s620 = int_to_ptr.vmem [resolvable:$true] %s619
          %622 = dma.vmem_to_hbm [thread:$0]  %s620, 128, %s8, [#allocation10]
        $region68: #{tpu_custom_call.1} parent=47 // pred_fallthru
          _
        // Predicated region
        $region69: #{tpu_custom_call.1} parent=47 // pred_check
          %p623 = pneg %p219
        $region70: #{tpu_custom_call.1} parent=47 // pred_check_branch
          %625 = sbr.rel (%p623) target = $region72
        $region71: #{tpu_custom_call.1} parent=47 // pred_region
          %626 = dma.done [#allocation10], 128
        $region72: #{tpu_custom_call.1} parent=47 // pred_fallthru
          _
      $region48: #{tpu_custom_call.1} parent=5 // pred_fallthru
        _
      %p627 = scmp.le.s32.totalorder 2, %s23
      // Predicated region
      $region73: #{tpu_custom_call.1} parent=5 // pred_check
        %p628 = pneg %p627
      $region74: #{tpu_custom_call.1} parent=5 // pred_check_branch
        %630 = sbr.rel (%p628) target = $region76
      $region75: #{tpu_custom_call.1} parent=5 // pred_region
        %s631 = ssub.s32 %s23, 2
        // Predicated region
        $region77: #{tpu_custom_call.1} parent=75 // pred_check
          %p632 = pneg %p204
        $region78: #{tpu_custom_call.1} parent=75 // pred_check_branch
          %634 = sbr.rel (%p632) target = $region80
        $region79: #{tpu_custom_call.1} parent=75 // pred_region
          %s635 = sand.u32 %s189, 1
          %s636 = scalar_lea.sflag [#allocation5], %s635
          %s637 = sand.u32 %s189, 1
          %s638 = smul.addr %s637, 8
          %s639 = scalar_lea.vmem [#allocation8], %s638
          %640 = dma.done %s636, 128
        $region80: #{tpu_custom_call.1} parent=75 // pred_fallthru
          _
      $region76: #{tpu_custom_call.1} parent=5 // pred_fallthru
        _
    $region6: #{tpu_custom_call.1} parent=1 // loop_footer
      %s27 = sadd.s32 1, %s23
    $region7: #{tpu_custom_call.1} parent=1 // loop_footer_branch
      %22 = sbr.rel target = $region3
    $region8: #{tpu_custom_call.1} parent=1 // loop_exit
      _
    %641 = vsyncpa [#allocation4], 1
    %s642 = scalar_lea.sflag [#allocation4], 1
    %643 = vsyncpa %s642, 1
    %644 = vsyncpa [#allocation7], 1
    %645 = vsyncpa [#allocation5], 1
    %s646 = scalar_lea.sflag [#allocation5], 1
    %647 = vsyncpa %s646, 1
    %648 = vsyncpa [#allocation10], 1

</llo_original>
